<compile_context>
chip_gen: v7x
topology: tpu7x:2x2x1
jax: 0.10.0
libtpu: 0.0.40
codegen_flags: <defaults>
</compile_context>

<pallas_src>
import functools

import jax
import jax.numpy as jnp
from jax.experimental import pallas as pl
from jax.experimental.pallas import tpu as pltpu


def _round_up(x, m):
    return ((x + m - 1) // m) * m


def encoder_block_kernel(x_ref, w_ref, b_ref, *rest, negative_slope, drop_rate,
                         training):
    if training and drop_rate > 0.0:
        u_ref, o_ref = rest
    else:
        (o_ref,) = rest

    # Matmul on the MXU with f32 accumulation, bias + LeakyReLU on the VPU.
    y = jnp.dot(x_ref[...], w_ref[...], preferred_element_type=jnp.float32)
    y = y + b_ref[...]                                     # (tm, tn) + (1, tn)
    y = jnp.where(y >= 0, y, jnp.float32(negative_slope) * y)   # LeakyReLU(0.2)

    if training and drop_rate > 0.0:
        # Inverted dropout: keep with prob (1 - p), scale survivors by 1/(1-p).
        keep = u_ref[...] >= jnp.float32(drop_rate)
        y = jnp.where(keep, y, 0.0) * jnp.float32(1.0 / (1.0 - drop_rate))

    o_ref[...] = y.astype(o_ref.dtype)


def _choose_tiles(B, in_dim, out_dim_p, use_dropout, budget_bytes=12 << 20):
    """Pick (tm, tn) tiles: lane-aligned, multiple-of-8 rows, and small enough
    that the double-buffered working set fits comfortably inside the scoped
    VMEM budget of every generation (incl. v7x's 64 MiB / 32 MiB default)."""
    # Lane-dense feature tile (out_dim_p is a multiple of 128 by construction).
    tn = 512 if out_dim_p % 512 == 0 else (256 if out_dim_p % 256 == 0 else 128)
    tn = min(tn, out_dim_p)
    # Batch tile: multiple of 8; prefer >= 2 tiles so the parallel batch axis
    # gives v7x's two TensorCores independent work.
    tm = min(512, _round_up(B, 8))
    if B >= 16 and B // tm < 2:
        tm = max(8, _round_up((B + 1) // 2, 8))
    # Shrink until the (double-buffered) tiles fit the budget.
    while True:
        bytes_ = 4 * (2 * tm * in_dim          # x tile, double-buffered
                      + 2 * in_dim * tn        # W column tile
                      + 2 * tn                 # bias tile
                      + 2 * tm * tn)           # output tile
        if use_dropout:
            bytes_ += 4 * 2 * tm * tn          # dropout uniforms tile
        if bytes_ <= budget_bytes:
            break
        if tn > 128:
            tn //= 2
        elif tm > 8:
            tm = max(8, (tm // 2 // 8) * 8)
        else:
            break
    return tm, tn


def encoder_block(x, w, b, *, do_rates=0.1, negative_slope=0.2, training=False,
                  key=None, seed=0, tm=None, tn=None):
    """x: (B, in_dim) f32, w: (in_dim, out_dim), b: (out_dim,) -> (B, out_dim)."""
    B, in_dim = x.shape
    assert w.shape[0] == in_dim
    out_dim = w.shape[1]
    drop_rate = float(do_rates)
    use_dropout = training and drop_rate > 0.0

    # Lane-dense output: pad the feature axis up to a multiple of 128.
    out_dim_p = _round_up(out_dim, 128)

    tm_auto, tn_auto = _choose_tiles(B, in_dim, out_dim_p, use_dropout)
    if tm is None:
        tm = tm_auto
    if tn is None:
        tn = tn_auto
    assert tm % 8 == 0, "batch tile must be a multiple of 8 (f32 sublanes)"
    assert tn % 128 == 0 and out_dim_p % tn == 0, "feature tile must be lane-aligned"

    # Pad batch up to a multiple of tm (zero rows, sliced off at the end).
    B_p = _round_up(B, tm)

    x_p = x if B_p == B else jnp.pad(x, ((0, B_p - B), (0, 0)))
    w_p = w if out_dim_p == out_dim else jnp.pad(w, ((0, 0), (0, out_dim_p - out_dim)))
    b_p = b if out_dim_p == out_dim else jnp.pad(b, (0, out_dim_p - out_dim))
    b2d = b_p.reshape(1, out_dim_p)

    grid = (B_p // tm, out_dim_p // tn)

    in_specs = [
        pl.BlockSpec((tm, in_dim), lambda i, j: (i, 0)),   # x row tile
        pl.BlockSpec((in_dim, tn), lambda i, j: (0, j)),   # W column tile
        pl.BlockSpec((1, tn), lambda i, j: (0, j)),        # bias tile
    ]
    inputs = [x_p, w_p, b2d]

    if use_dropout:
        if key is None:
            key = jax.random.PRNGKey(seed)
        u = jax.random.uniform(key, (B_p, out_dim_p), dtype=jnp.float32)
        in_specs.append(pl.BlockSpec((tm, tn), lambda i, j: (i, j)))
        inputs.append(u)

    kernel = functools.partial(
        encoder_block_kernel,
        negative_slope=float(negative_slope),
        drop_rate=drop_rate,
        training=training,
    )

    out_p = pl.pallas_call(
        kernel,
        out_shape=jax.ShapeDtypeStruct((B_p, out_dim_p), x.dtype),
        grid=grid,
        in_specs=in_specs,
        out_specs=pl.BlockSpec((tm, tn), lambda i, j: (i, j)),
        compiler_params=pltpu.CompilerParams(
            # Both grid axes are independent (dropout mask is positional, not
            # order-dependent), so they can be sharded across v7x's two TCs.
            dimension_semantics=("parallel", "parallel"),
        ),
    )(*inputs)

    # TODO(synk): for very wide in_dim add a K grid axis + f32 accumulator
    # scratch (pl.when init/finalize), and fuse a stack of EncoderBlocks into a
    # single pallas_call (activations resident in VMEM) to amortize launch
    # overhead; a lone small layer like 8x32x64 is pure launch overhead.
    if B_p != B or out_dim_p != out_dim:
        out_p = out_p[:B, :out_dim]
    return out_p


def encoder_block_ref(x, w, b, negative_slope=0.2):
    # Pure-JAX reference (eval mode: dropout is identity).
    y = x @ w + b
    return jnp.where(y >= 0, y, negative_slope * y)


if __name__ == "__main__":
    # Module config: EncoderBlock(in_dim=32, out_dim=64, do_rates=0.1)
    B, in_dim, out_dim = 8, 32, 64
    do_rates = 0.1

    key = jax.random.PRNGKey(0)
    kx, kw, kb = jax.random.split(key, 3)

    x = jax.random.normal(kx, (B, in_dim), dtype=jnp.float32)
    # Init matching nn.Linear's U(-1/sqrt(in_dim), 1/sqrt(in_dim)).
    bound = 1.0 / (in_dim ** 0.5)
    w = jax.random.uniform(kw, (in_dim, out_dim), jnp.float32, -bound, bound)
    b = jax.random.uniform(kb, (out_dim,), jnp.float32, -bound, bound)

    # Eval-mode forward (dropout = identity), checked against pure-JAX reference.
    out = jax.block_until_ready(
        encoder_block(x, w, b, do_rates=do_rates, training=False))
    ref = encoder_block_ref(x, w, b)
    assert out.shape == (B, out_dim)
    assert jnp.allclose(out, ref, atol=1e-5, rtol=1e-5), "mismatch vs reference"

    # Training-mode forward: every output element must be either dropped (0)
    # or the activation scaled by 1/(1-p) (inverted dropout).
    inv_keep = 1.0 / (1.0 - do_rates)
    out_train = jax.block_until_ready(
        encoder_block(x, w, b, do_rates=do_rates, training=True, seed=1234))
    assert out_train.shape == (B, out_dim)
    ok = (jnp.isclose(out_train, 0.0, atol=1e-6)
          | jnp.isclose(out_train, ref * inv_keep, rtol=1e-4, atol=1e-4))
    assert bool(ok.all()), "training-mode dropout semantics mismatch"

    print("KERNEL_OK")
</pallas_src>

<mosaic_0001>
module attributes {stable_mosaic.version = 11 : i64} {
  func.func @encoder_block_kernel(%arg0: i32, %arg1: i32, %arg2: memref<8x32xf32, #tpu.memory_space<vmem>>, %arg3: memref<32x128xf32, #tpu.memory_space<vmem>>, %arg4: memref<1x128xf32, #tpu.memory_space<vmem>>, %arg5: memref<8x128xf32, #tpu.memory_space<vmem>>) attributes {dimension_semantics = [#tpu.dimension_semantics<parallel>, #tpu.dimension_semantics<parallel>], iteration_bounds = array<i64: 1, 1>, scalar_prefetch = 0 : i64, scratch_operands = 0 : i64, tpu.core_type = #tpu.core_type<tc>, window_params = [{transform_indices = @transform_0, window_bounds = array<i64: 8, 32>}, {transform_indices = @transform_1, window_bounds = array<i64: 32, 128>}, {transform_indices = @transform_2, window_bounds = array<i64: 1, 128>}, {transform_indices = @transform_3, window_bounds = array<i64: 8, 128>}]} {
    %c0 = arith.constant 0 : index
    %c0_0 = arith.constant 0 : index
    %0 = vector.load %arg2[%c0, %c0_0] : memref<8x32xf32, #tpu.memory_space<vmem>>, vector<8x32xf32>
    %c0_1 = arith.constant 0 : index
    %c0_2 = arith.constant 0 : index
    %1 = vector.load %arg3[%c0_1, %c0_2] : memref<32x128xf32, #tpu.memory_space<vmem>>, vector<32x128xf32>
    %cst = arith.constant dense<0.000000e+00> : vector<8x128xf32>
    %2 = tpu.matmul %0, %1, %cst {dimension_numbers = #tpu.dot_dimension_numbers<[1], [0], [0], [1], [0, 0, 1, 1], [], []>} : vector<8x32xf32>, vector<32x128xf32>, vector<8x128xf32> -> vector<8x128xf32>
    %c0_3 = arith.constant 0 : index
    %c0_4 = arith.constant 0 : index
    %3 = vector.load %arg4[%c0_3, %c0_4] : memref<1x128xf32, #tpu.memory_space<vmem>>, vector<1x128xf32>
    %4 = vector.broadcast %3 : vector<1x128xf32> to vector<8x128xf32>
    %5 = arith.addf %2, %4 : vector<8x128xf32>
    %cst_5 = arith.constant 0.000000e+00 : f32
    %6 = vector.broadcast %cst_5 : f32 to vector<8x128xf32>
    %7 = arith.cmpf oge, %5, %6 : vector<8x128xf32>
    %cst_6 = arith.constant 2.000000e-01 : f32
    %8 = vector.broadcast %cst_6 : f32 to vector<8x128xf32>
    %9 = arith.mulf %8, %5 : vector<8x128xf32>
    %10 = arith.select %7, %5, %9 : vector<8x128xi1>, vector<8x128xf32>
    %c0_7 = arith.constant 0 : index
    %c0_8 = arith.constant 0 : index
    %11 = vector.load %arg5[%c0_7, %c0_8] : memref<8x128xf32, #tpu.memory_space<vmem>>, vector<8x128xf32>
    tpu.vector_store %arg5[%c0_7, %c0_8], %10 {strides = array<i32>} : memref<8x128xf32, #tpu.memory_space<vmem>>, vector<8x128xf32>,
    return
  }
  func.func @transform_0(%arg0: i32, %arg1: i32) -> (i32, i32) {
    %c0_i32 = arith.constant 0 : i32
    %c0_i32_0 = arith.constant 0 : i32
    return %arg0, %c0_i32 : i32, i32
  }
  func.func @transform_1(%arg0: i32, %arg1: i32) -> (i32, i32) {
    %c0_i32 = arith.constant 0 : i32
    %c0_i32_0 = arith.constant 0 : i32
    return %c0_i32, %arg1 : i32, i32
  }
  func.func @transform_2(%arg0: i32, %arg1: i32) -> (i32, i32) {
    %c0_i32 = arith.constant 0 : i32
    %c0_i32_0 = arith.constant 0 : i32
    return %c0_i32, %arg1 : i32, i32
  }
  func.func @transform_3(%arg0: i32, %arg1: i32) -> (i32, i32) {
    %c0_i32 = arith.constant 0 : i32
    return %arg0, %arg1 : i32, i32
  }
}

</mosaic_0001>

<llo_original>
// kernel: tpu_custom_call.1
$region0: #{tpu_custom_call.1}
  #allocation0 [shape = 'u32[]', space=smem, size = 0x4, offset = 0x4, fixed_abs, tag = 'smem constant byte address 0x4 - core index']
  #allocation1 [shape = 'u32[144,128]{1,0:T(1,128)}', space=vmem, size = 0x12000, scoped, tag = 'internal scratch']
  %s0 = inlined_call_operand.hbm [shape: f32[8,32], index: 0, kind: input, shape index: {}]
  %s1 = inlined_call_operand.hbm [shape: f32[32,128], index: 1, kind: input, shape index: {}]
  %s2 = inlined_call_operand.vmem [shape: f32[1,128], index: 2, kind: input, shape index: {}]
  %s3 = inlined_call_operand.hbm [shape: f32[8,128], index: 3, kind: output, shape index: {}]
  %s4 = sld [smem:[#allocation0]]
  $region30: #{tpu_custom_call.1} parent=0
    _
  %s6 = ssub.s32 1, %s4
  %s7 = scalar_select 0, %s6, %s4
  $region1: #{tpu_custom_call.1} parent=0
    #allocation2 [shape = 'u8[4096]{0}', space=vmem, size = 0x1000, scoped, tag = 'input window, operand 0, single buffered']
    #allocation3 [shape = 's32[1]{0}', space=sflag, size = 0x4, scoped, tag = 'scoped memory for tpu_custom_call.1']
    #allocation4 [shape = 's32[1]{0}', space=sflag, size = 0x4, scoped, tag = 'scoped memory for tpu_custom_call.1']
    #allocation5 [shape = 'u8[16384]{0}', space=vmem, size = 0x4000, scoped, tag = 'input window, operand 1, single buffered']
    #allocation6 [shape = 's32[1]{0}', space=sflag, size = 0x4, scoped, tag = 'scoped memory for tpu_custom_call.1']
    #allocation7 [shape = 'u8[4096]{0}', space=vmem, size = 0x1000, scoped, tag = 'output window, operand 0, single buffered']
    %8 = vsyncpa [#allocation3], 0
    %9 = vsyncpa [#allocation6], 0
    %10 = vsyncpa [#allocation4], 0
    // Predicated region
    $region2: #{tpu_custom_call.1} parent=1 // pred_check
      _
    $region3: #{tpu_custom_call.1} parent=1 // pred_check_branch
      %12 = sbr.rel (0) target = $region5
    $region4: #{tpu_custom_call.1} parent=1 // pred_region
      %s14 = ssub.s32 128, 128
      %15 = vsyncadd [#allocation3], %s14
      %s17 = sshll.u32 [#allocation2], 4
      %s18 = int_to_ptr.vmem [resolvable:$true] %s17
      %20 = dma.hbm_to_vmem [thread:$0]  %s0, 128, %s18, [#allocation3]
    $region5: #{tpu_custom_call.1} parent=1 // pred_fallthru
      _
    // Predicated region
    $region6: #{tpu_custom_call.1} parent=1 // pred_check
      _
    $region7: #{tpu_custom_call.1} parent=1 // pred_check_branch
      %22 = sbr.rel (0) target = $region9
    $region8: #{tpu_custom_call.1} parent=1 // pred_region
      %s24 = ssub.s32 512, 512
      %25 = vsyncadd [#allocation6], %s24
      %s26 = sshll.u32 [#allocation5], 4
      %s27 = int_to_ptr.vmem [resolvable:$true] %s26
      %32 = dma.hbm_to_vmem [thread:$0]  %s1, 512, %s27, [#allocation6], 128, 128, 8
    $region9: #{tpu_custom_call.1} parent=1 // pred_fallthru
      _
    // Predicated region
    $region10: #{tpu_custom_call.1} parent=1 // pred_check
      _
    $region11: #{tpu_custom_call.1} parent=1 // pred_check_branch
      %34 = sbr.rel (0) target = $region13
    $region12: #{tpu_custom_call.1} parent=1 // pred_region
      _
    $region13: #{tpu_custom_call.1} parent=1 // pred_fallthru
      _
    // Predicated region
    $region14: #{tpu_custom_call.1} parent=1 // pred_check
      _
    $region15: #{tpu_custom_call.1} parent=1 // pred_check_branch
      %36 = sbr.rel (0) target = $region17
    $region16: #{tpu_custom_call.1} parent=1 // pred_region
      %37 = dma.done [#allocation3], 128
    $region17: #{tpu_custom_call.1} parent=1 // pred_fallthru
      _
    // Predicated region
    $region18: #{tpu_custom_call.1} parent=1 // pred_check
      _
    $region19: #{tpu_custom_call.1} parent=1 // pred_check_branch
      %39 = sbr.rel (0) target = $region21
    $region20: #{tpu_custom_call.1} parent=1 // pred_region
      %40 = dma.done [#allocation6], 512
    $region21: #{tpu_custom_call.1} parent=1 // pred_fallthru
      _
    %v41 = vld [vmem:[#allocation2] sm:$0xff]
    %v42 = vld [vmem:[#allocation5] sm:$0xff]
    %v43 = vld [vmem:[#allocation5 + $0x8] sm:$0xff]
    %v44 = vld [vmem:[#allocation5 + $0x10] sm:$0xff]
    %v45 = vld [vmem:[#allocation5 + $0x18] sm:$0xff]
    %v46 = vld [vmem:[%s2] sm:$0x1]
    %v48 = vlaneseq
    %v49 = vshrl.u32 %v48, 7
    %v50 = vsub.s32 0, %v49
    %v51 = vrot.slane %v46, %v50
    %vm53 = vcmask 261120
    %v55 = vsel %vm53, %v41, 0
    %57 = vmatprep.subr.mxu0 0.0
    %58 = vmatpush1.msra.mxu0 %v42
    %59 = vmatprep.subr.mxu0 0.0
    %60 = vmatpush1.msra.mxu0 %v43
    %61 = vmatprep.subr.mxu0 0.0
    %62 = vmatpush1.msra.mxu0 %v44
    %63 = vmatprep.subr.mxu0 0.0
    %64 = vmatpush1.msra.mxu0 %v45
    %65 = vmatprep.subr.mxu0 0.0
    %66 = vmatpush1.msra.mxu0 0.0
    %67 = vmatprep.subr.mxu0 0.0
    %68 = vmatpush1.msra.mxu0 0.0
    %69 = vmatprep.subr.mxu0 0.0
    %70 = vmatpush1.msra.mxu0 0.0
    %71 = vmatprep.subr.mxu0 0.0
    %72 = vmatpush1.msra.mxu0 0.0
    %73 = vmatprep.subr.mxu0 0.0
    %74 = vmatpush1.msra.mxu0 0.0
    %75 = vmatprep.subr.mxu0 0.0
    %76 = vmatpush1.msra.mxu0 0.0
    %77 = vmatprep.subr.mxu0 0.0
    %78 = vmatpush1.msra.mxu0 0.0
    %79 = vmatprep.subr.mxu0 0.0
    %80 = vmatpush1.msra.mxu0 0.0
    %81 = vmatprep.subr.mxu0 0.0
    %82 = vmatpush1.msra.mxu0 0.0
    %83 = vmatprep.subr.mxu0 0.0
    %84 = vmatpush1.msra.mxu0 0.0
    %85 = vmatprep.subr.mxu0 0.0
    %86 = vmatpush1.msra.mxu0 0.0
    %87 = vmatprep.subr.mxu0 0.0
    %88 = vmatpush1.msra.mxu0 0.0
    %89 = vmatprep.subr.mxu0 0.0
    %90 = vmatpush1.msra.mxu0 0.0
    %91 = vmatprep.subr.mxu0 0.0
    %92 = vmatpush1.msra.mxu0 0.0
    %93 = vmatprep.subr.mxu0 0.0
    %94 = vmatpush1.msra.mxu0 0.0
    %95 = vmatprep.subr.mxu0 0.0
    %96 = vmatpush1.msra.mxu0 0.0
    %97 = vmatprep.subr.mxu0 0.0
    %98 = vmatpush1.msra.mxu0 0.0
    %99 = vmatprep.subr.mxu0 0.0
    %100 = vmatpush1.msra.mxu0 0.0
    %101 = vmatprep.subr.mxu0 0.0
    %102 = vmatpush1.msra.mxu0 0.0
    %103 = vmatprep.subr.mxu0 0.0
    %104 = vmatpush1.msra.mxu0 0.0
    %105 = vmatprep.subr.mxu0 0.0
    %106 = vmatpush1.msra.mxu0 0.0
    %107 = vmatprep.subr.mxu0 0.0
    %108 = vmatpush1.msra.mxu0 0.0
    %109 = vmatprep.subr.mxu0 0.0
    %110 = vmatpush1.msra.mxu0 0.0
    %111 = vmatprep.subr.mxu0 0.0
    %112 = vmatpush1.msra.mxu0 0.0
    %113 = vmatprep.subr.mxu0 0.0
    %114 = vmatpush1.msra.mxu0 0.0
    %115 = vmatprep.subr.mxu0 0.0
    %116 = vmatpush1.msra.mxu0 0.0
    %117 = vmatprep.subr.mxu0 0.0
    %118 = vmatpush1.msra.mxu0 0.0
    %119 = vmatprep.subr.mxu0 0.0
    %120 = vmatpush1.msra.mxu0 0.0
    %121 = vmatprep.mubr.f32.mxu0 0.0
    %122 = vmatmul.mubr.f32.gmra.mrb[0].mxu0 %v55
    %v123 = vpop.f32.mrb[0].mxu0
    %v124 = vadd.f32 %v51, %v123
    %v125 = vpop.f32.mrb[0].mxu0
    %126 = vdwg.mxu0
    %vm127 = vcmp.ge.f32.partialorder %v124, 0.0
    %v128 = vmul.f32 %v124, 0.2
    %v129 = vsel %vm127, %v124, %v128
    %130 = vst [vmem:[#allocation7] sm:$0xff] %v129
    // Predicated region
    $region22: #{tpu_custom_call.1} parent=1 // pred_check
      _
    $region23: #{tpu_custom_call.1} parent=1 // pred_check_branch
      %132 = sbr.rel (0) target = $region25
    $region24: #{tpu_custom_call.1} parent=1 // pred_region
      %s134 = ssub.s32 128, 128
      %135 = vsyncadd [#allocation4], %s134
      %s137 = sshll.u32 [#allocation7], 4
      %s138 = int_to_ptr.vmem [resolvable:$true] %s137
      %140 = dma.vmem_to_hbm [thread:$0]  %s138, 128, %s3, [#allocation4]
    $region25: #{tpu_custom_call.1} parent=1 // pred_fallthru
      _
    // Predicated region
    $region26: #{tpu_custom_call.1} parent=1 // pred_check
      _
    $region27: #{tpu_custom_call.1} parent=1 // pred_check_branch
      %142 = sbr.rel (0) target = $region29
    $region28: #{tpu_custom_call.1} parent=1 // pred_region
      %143 = dma.done [#allocation4], 128
    $region29: #{tpu_custom_call.1} parent=1 // pred_fallthru
      _
    %144 = vsyncpa [#allocation3], 1
    %145 = vsyncpa [#allocation6], 1
    %146 = vsyncpa [#allocation4], 1

</llo_original>
